<compile_context>
chip_gen: v7x
topology: tpu7x:2x2x1
jax: 0.10.0
libtpu: 0.0.40
codegen_flags: <defaults>
</compile_context>

<pallas_src>
import functools
import math

import jax
import jax.numpy as jnp
from jax.experimental import pallas as pl
from jax.experimental.pallas import tpu as pltpu

_MAX_DMA_CHUNKS = 4            # handful of concurrent DMAs at most
_MIN_CHUNK_BYTES = 1 << 20     # don't bother splitting below ~1 MiB per chunk


def _make_flatten_dma_kernel(row_bounds):
    """Kernel factory: direct HBM->HBM copy of (B, flat), split over static row chunks."""
    n_chunks = len(row_bounds) - 1

    def kernel(x_hbm, o_hbm, sems):
        copies = []
        # Issue all DMAs first (overlap across DMA engines), then wait on all.
        for c in range(n_chunks):
            start = row_bounds[c]
            size = row_bounds[c + 1] - row_bounds[c]
            cp = pltpu.make_async_copy(
                x_hbm.at[pl.ds(start, size)],
                o_hbm.at[pl.ds(start, size)],
                sems.at[c],
            )
            cp.start()
            copies.append(cp)
        for cp in copies:
            cp.wait()

    return kernel


def flatten_pallas(x):
    """Flatten (B, ...) -> (B, prod(rest)); same semantics as torch x.view(B, -1)."""
    B = x.shape[0]
    flat = math.prod(x.shape[1:]) if x.ndim > 1 else 1

    # Row-major reshape is metadata-only; this IS the flatten. The Pallas call
    # below only materializes the result buffer via a raw HBM->HBM DMA.
    x2d = x.reshape(B, flat)

    itemsize = jnp.dtype(x.dtype).itemsize
    total_bytes = B * flat * itemsize

    # Static chunking along rows: at most _MAX_DMA_CHUNKS, at least 1, never
    # more chunks than rows, and only split once chunks are >= ~1 MiB.
    n_chunks = int(max(1, min(_MAX_DMA_CHUNKS, B, total_bytes // _MIN_CHUNK_BYTES)))
    row_bounds = [round(c * B / n_chunks) for c in range(n_chunks + 1)]

    kernel = _make_flatten_dma_kernel(tuple(row_bounds))

    return pl.pallas_call(
        kernel,
        out_shape=jax.ShapeDtypeStruct((B, flat), x.dtype),
        # Keep both operands in place (HBM); no VMEM staging, no auto-pipeline.
        in_specs=[pl.BlockSpec(memory_space=pl.ANY)],
        out_specs=pl.BlockSpec(memory_space=pl.ANY),
        scratch_shapes=[pltpu.SemaphoreType.DMA((n_chunks,))],
        cost_estimate=pl.CostEstimate(
            flops=0,
            transcendentals=0,
            bytes_accessed=2 * total_bytes,  # one HBM read + one HBM write
        ),
    )(x2d)


if __name__ == "__main__":
    key = jax.random.PRNGKey(0)
    B, C, H, W = 2, 4, 16, 16
    x = jax.random.normal(key, (B, C, H, W), dtype=jnp.float32)

    y = flatten_pallas(x)
    jax.block_until_ready(y)

    # Reference semantics: torch x.view(B, -1) == row-major reshape.
    y_ref = x.reshape(B, -1)
    assert y.shape == (B, C * H * W), y.shape
    assert jnp.array_equal(y, y_ref), "mismatch with reference flatten"

    print("KERNEL_OK")
</pallas_src>

<mosaic_0001>
module attributes {stable_mosaic.version = 11 : i64} {
  func.func @kernel(%arg0: memref<2x1024xf32, #tpu.memory_space<any>>, %arg1: memref<2x1024xf32, #tpu.memory_space<any>>, %arg2: memref<1x!tpu.dma_semaphore, #tpu.memory_space<semaphore_mem>>) attributes {dimension_semantics = [], scalar_prefetch = 0 : i64, scratch_operands = 1 : i64, tpu.core_type = #tpu.core_type<tc>} {
    %c0_i32 = arith.constant 0 : i32
    %c0_i32_0 = arith.constant 0 : i32
    %c0_i32_1 = arith.constant 0 : i32
    %0 = tpu.memref_slice %arg0[%c0_i32_0, %c0_i32_1] : memref<2x1024xf32, #tpu.memory_space<any>> -> memref<2x1024xf32, #tpu.memory_space<any>>
    %c0_i32_2 = arith.constant 0 : i32
    %c0_i32_3 = arith.constant 0 : i32
    %1 = tpu.memref_slice %arg1[%c0_i32_2, %c0_i32_3] : memref<2x1024xf32, #tpu.memory_space<any>> -> memref<2x1024xf32, #tpu.memory_space<any>>
    %2 = tpu.memref_slice %arg2[%c0_i32] : memref<1x!tpu.dma_semaphore, #tpu.memory_space<semaphore_mem>> -> memref<1x!tpu.dma_semaphore, #tpu.memory_space<semaphore_mem>>
    %3 = tpu.memref_squeeze %2 : memref<1x!tpu.dma_semaphore, #tpu.memory_space<semaphore_mem>> -> memref<!tpu.dma_semaphore, #tpu.memory_space<semaphore_mem>>
    tpu.enqueue_dma source(%0 : memref<2x1024xf32, #tpu.memory_space<any>>) target(%1 : memref<2x1024xf32, #tpu.memory_space<any>>) target_semaphore(%3 : memref<!tpu.dma_semaphore, #tpu.memory_space<semaphore_mem>>)
    %c0_i32_4 = arith.constant 0 : i32
    %c0_i32_5 = arith.constant 0 : i32
    %c0_i32_6 = arith.constant 0 : i32
    %4 = tpu.memref_slice %arg0[%c0_i32_5, %c0_i32_6] : memref<2x1024xf32, #tpu.memory_space<any>> -> memref<2x1024xf32, #tpu.memory_space<any>>
    %c0_i32_7 = arith.constant 0 : i32
    %c0_i32_8 = arith.constant 0 : i32
    %5 = tpu.memref_slice %arg1[%c0_i32_7, %c0_i32_8] : memref<2x1024xf32, #tpu.memory_space<any>> -> memref<2x1024xf32, #tpu.memory_space<any>>
    %6 = tpu.memref_slice %arg2[%c0_i32_4] : memref<1x!tpu.dma_semaphore, #tpu.memory_space<semaphore_mem>> -> memref<1x!tpu.dma_semaphore, #tpu.memory_space<semaphore_mem>>
    %7 = tpu.memref_squeeze %6 : memref<1x!tpu.dma_semaphore, #tpu.memory_space<semaphore_mem>> -> memref<!tpu.dma_semaphore, #tpu.memory_space<semaphore_mem>>
    tpu.wait_dma2 semaphore(%7 : memref<!tpu.dma_semaphore, #tpu.memory_space<semaphore_mem>>) src(%4 : memref<2x1024xf32, #tpu.memory_space<any>>) dst(%5 : memref<2x1024xf32, #tpu.memory_space<any>>)
    return
  }
}

</mosaic_0001>

<llo_original>
// kernel: tpu_custom_call.1
$region0: #{tpu_custom_call.1}
  #allocation0 [shape = 'u32[]', space=smem, size = 0x4, offset = 0x4, fixed_abs, tag = 'smem constant byte address 0x4 - core index']
  #allocation1 [shape = 'u32[144,128]{1,0:T(1,128)}', space=vmem, size = 0x12000, scoped, tag = 'internal scratch']
  #allocation2 [shape = 's32[1]{0}', space=sflag, size = 0x4, scoped, tag = 'scratch operand']
  #allocation3 [shape = 's32[]', space=sflag, size = 0x4, offset = 0, fixed_abs, tag = 'sflag constant byte address 0x0 - dummy sync flag']
  #allocation4 [shape = 'u32[0]{0}', space=smem, size = 0, offset = 0, fixed_abs, tag = 'smem constant byte address 0x0 - null']
  %s0 = inlined_call_operand.hbm [shape: f32[2,1024], index: 0, kind: input, shape index: {}]
  %s1 = inlined_call_operand.hbm [shape: f32[2,1024], index: 1, kind: output, shape index: {}]
  %s2 = sld [smem:[#allocation0]]
  $region2: #{tpu_custom_call.1} parent=0
    _
  %s4 = ssub.s32 1, %s2
  %s5 = scalar_select 0, %s4, %s2
  %s7 = sshll.u32 1, 14
  %s8 = sxor.u32 4294967295, %s7
  %s11 = sshll.u32 3, 24
  %s12 = sxor.u32 4294967295, %s11
  %s13 = sand.u32 0, %s12
  %s15 = sor.u32 %s13, 0
  %18 = dma.general %s0, 256, %s1, [#allocation2], [#allocation3], [#allocation4], %s15, 0
  %s19 = smul.u32 2, 1
  %s20 = smul.u32 %s19, 8
  %s21 = sshll.u32 %s20, 4
  %22 = dma.done [#allocation2], %s21
  %23 = vsyncmov [#allocation2]
  %s24 = vpop.sfrf %23
  %p25 = scmp.eq.s32.totalorder %s24, 0
  %p26 = pneg %p25
  %28 = shalt.err (%p26)

</llo_original>
